<compile_context>
chip_gen: v7x
topology: tpu7x:2x2x1
jax: 0.10.0
libtpu: 0.0.40
codegen_flags: <defaults>
</compile_context>

<pallas_src>
import functools

import jax
import jax.numpy as jnp
from jax.experimental import pallas as pl
from jax.experimental.pallas import tpu as pltpu


def mlp_kernel(x_ref, w1_ref, b1_ref, w2_ref, b2_ref, w3_ref, b3_ref, o_ref):
    # Layer 1: Linear + ReLU (f32 accumulation on the MXU, f32 elementwise).
    h1 = jnp.dot(x_ref[...], w1_ref[...], preferred_element_type=jnp.float32)
    h1 = jnp.maximum(h1 + b1_ref[...], 0.0)
    # Layer 2: Linear + ReLU.
    h2 = jnp.dot(h1.astype(w2_ref.dtype), w2_ref[...],
                 preferred_element_type=jnp.float32)
    h2 = jnp.maximum(h2 + b2_ref[...], 0.0)
    # Output layer: Linear (logits, no activation). Columns padded to 128 ->
    # unmasked, lane-dense store.
    out = jnp.dot(h2.astype(w3_ref.dtype), w3_ref[...],
                  preferred_element_type=jnp.float32)
    o_ref[...] = (out + b3_ref[...]).astype(o_ref.dtype)


@functools.partial(jax.jit, static_argnames=("tile_b", "compute_dtype"))
def mlp_forward(x, w1, b1, w2, b2, w3, b3, *, tile_b=1024,
                compute_dtype=jnp.float32):
    """x: [B, F]; w*: [in, out]; b*: [1, out]. Returns [B, n_out] f32 logits."""
    B, F = x.shape
    H1 = w1.shape[1]
    H2 = w2.shape[1]
    n_out = w3.shape[1]

    # --- Padding for TPU-friendly layouts ------------------------------------
    # K of layer 1 up to a sublane group (>= 8, multiple of 8).
    F_pad = max(8, pl.cdiv(F, 8) * 8)
    # Output columns up to a full lane width (multiple of 128) -> lane-dense store.
    OUT_pad = max(128, pl.cdiv(n_out, 128) * 128)
    # Batch tile: multiple of 8, no bigger than the (padded) batch.
    tile_b = int(min(tile_b, max(8, pl.cdiv(B, 8) * 8)))
    tile_b = max(8, (tile_b // 8) * 8)
    B_pad = pl.cdiv(B, tile_b) * tile_b

    cdt = compute_dtype
    # x: batch-pad + K-pad in a single copy pass.
    xp = jnp.zeros((B_pad, F_pad), cdt).at[:B, :F].set(x.astype(cdt))
    w1p = jnp.zeros((F_pad, H1), cdt).at[:F, :].set(w1.astype(cdt))
    w2p = w2.astype(cdt)
    w3p = jnp.zeros((H2, OUT_pad), cdt).at[:, :n_out].set(w3.astype(cdt))
    # Biases / elementwise stay in f32.
    b1p = b1.astype(jnp.float32)
    b2p = b2.astype(jnp.float32)
    b3p = jnp.zeros((1, OUT_pad), jnp.float32).at[:, :n_out].set(
        b3.astype(jnp.float32))

    grid = (B_pad // tile_b,)

    itemsize = jnp.dtype(cdt).itemsize
    flops = 2 * B_pad * (F_pad * H1 + H1 * H2 + H2 * OUT_pad)
    bytes_accessed = (
        B_pad * F_pad * itemsize                            # x read
        + (F_pad * H1 + H1 * H2 + H2 * OUT_pad) * itemsize  # weights (once)
        + (H1 + H2 + OUT_pad) * 4                           # biases (f32)
        + B_pad * OUT_pad * 4                               # output write (f32)
    )

    out_padded = pl.pallas_call(
        mlp_kernel,
        out_shape=jax.ShapeDtypeStruct((B_pad, OUT_pad), jnp.float32),
        grid=grid,
        in_specs=[
            # Batch-streamed activation tile (double-buffered by the pipeline).
            pl.BlockSpec((tile_b, F_pad), lambda i: (i, 0)),
            # Weights / biases: constant index map -> fetched once, VMEM-resident.
            pl.BlockSpec((F_pad, H1), lambda i: (0, 0)),
            pl.BlockSpec((1, H1), lambda i: (0, 0)),
            pl.BlockSpec((H1, H2), lambda i: (0, 0)),
            pl.BlockSpec((1, H2), lambda i: (0, 0)),
            pl.BlockSpec((H2, OUT_pad), lambda i: (0, 0)),
            pl.BlockSpec((1, OUT_pad), lambda i: (0, 0)),
        ],
        out_specs=pl.BlockSpec((tile_b, OUT_pad), lambda i: (i, 0)),
        compiler_params=pltpu.CompilerParams(
            dimension_semantics=("parallel",)),
        cost_estimate=pl.CostEstimate(
            flops=flops, transcendentals=0, bytes_accessed=bytes_accessed),
    )(xp, w1p, b1p, w2p, b2p, w3p, b3p)

    # Slice padded batch rows / padded logit columns back off.
    return out_padded[:B, :n_out]


def init_linear(key, fan_in, fan_out):
    # PyTorch nn.Linear default init: U(-1/sqrt(fan_in), 1/sqrt(fan_in)).
    kw, kb = jax.random.split(key)
    bound = 1.0 / jnp.sqrt(float(fan_in))
    # Stored as [in, out] (transposed vs torch's [out, in]).
    w = jax.random.uniform(kw, (fan_in, fan_out), jnp.float32, -bound, bound)
    b = jax.random.uniform(kb, (1, fan_out), jnp.float32, -bound, bound)
    return w, b


def reference_forward(x, w1, b1, w2, b2, w3, b3):
    h1 = jnp.maximum(x @ w1 + b1, 0.0)
    h2 = jnp.maximum(h1 @ w2 + b2, 0.0)
    return h2 @ w3 + b3


if __name__ == "__main__":
    key = jax.random.PRNGKey(0)
    k_x, k_x2, k1, k2, k3 = jax.random.split(key, 5)

    batch = 8
    n_features = 4      # len(x[0]) in the module (Iris-like input)
    h1_dim, h2_dim, n_classes = 64, 32, 3

    x = jax.random.normal(k_x, (batch, n_features), jnp.float32)
    w1, b1 = init_linear(k1, n_features, h1_dim)
    w2, b2 = init_linear(k2, h1_dim, h2_dim)
    w3, b3 = init_linear(k3, h2_dim, n_classes)

    # Small-batch case (matches the module's typical Iris-sized input).
    out = mlp_forward(x, w1, b1, w2, b2, w3, b3)
    jax.block_until_ready(out)
    ref = reference_forward(x, w1, b1, w2, b2, w3, b3)
    assert out.shape == (batch, n_classes)
    assert jnp.allclose(out, ref, atol=1e-5, rtol=1e-5)

    # Larger, non-tile-multiple batch to exercise multiple pipelined grid steps.
    big_b = 1000
    x_big = jax.random.normal(k_x2, (big_b, n_features), jnp.float32)
    out_big = mlp_forward(x_big, w1, b1, w2, b2, w3, b3, tile_b=256)
    jax.block_until_ready(out_big)
    ref_big = reference_forward(x_big, w1, b1, w2, b2, w3, b3)
    assert out_big.shape == (big_b, n_classes)
    assert jnp.allclose(out_big, ref_big, atol=1e-5, rtol=1e-5)

    print("KERNEL_OK")
</pallas_src>

<mosaic_0001>
module attributes {stable_mosaic.version = 11 : i64} {
  func.func @mlp_kernel(%arg0: i32, %arg1: memref<8x8xf32, #tpu.memory_space<vmem>>, %arg2: memref<8x64xf32, #tpu.memory_space<vmem>>, %arg3: memref<1x64xf32, #tpu.memory_space<vmem>>, %arg4: memref<64x32xf32, #tpu.memory_space<vmem>>, %arg5: memref<1x32xf32, #tpu.memory_space<vmem>>, %arg6: memref<32x128xf32, #tpu.memory_space<vmem>>, %arg7: memref<1x128xf32, #tpu.memory_space<vmem>>, %arg8: memref<8x128xf32, #tpu.memory_space<vmem>>) attributes {dimension_semantics = [#tpu.dimension_semantics<parallel>], iteration_bounds = array<i64: 1>, scalar_prefetch = 0 : i64, scratch_operands = 0 : i64, tpu.core_type = #tpu.core_type<tc>, window_params = [{transform_indices = @transform_0, window_bounds = array<i64: 8, 8>}, {pipeline_mode = #tpu.pipeline_mode<synchronous>, transform_indices = @transform_1, window_bounds = array<i64: 8, 64>}, {pipeline_mode = #tpu.pipeline_mode<synchronous>, transform_indices = @transform_2, window_bounds = array<i64: 1, 64>}, {pipeline_mode = #tpu.pipeline_mode<synchronous>, transform_indices = @transform_3, window_bounds = array<i64: 64, 32>}, {pipeline_mode = #tpu.pipeline_mode<synchronous>, transform_indices = @transform_4, window_bounds = array<i64: 1, 32>}, {pipeline_mode = #tpu.pipeline_mode<synchronous>, transform_indices = @transform_5, window_bounds = array<i64: 32, 128>}, {pipeline_mode = #tpu.pipeline_mode<synchronous>, transform_indices = @transform_6, window_bounds = array<i64: 1, 128>}, {transform_indices = @transform_7, window_bounds = array<i64: 8, 128>}]} {
    %c0 = arith.constant 0 : index
    %c0_0 = arith.constant 0 : index
    %0 = vector.load %arg1[%c0, %c0_0] : memref<8x8xf32, #tpu.memory_space<vmem>>, vector<8x8xf32>
    %c0_1 = arith.constant 0 : index
    %c0_2 = arith.constant 0 : index
    %1 = vector.load %arg2[%c0_1, %c0_2] : memref<8x64xf32, #tpu.memory_space<vmem>>, vector<8x64xf32>
    %cst = arith.constant dense<0.000000e+00> : vector<8x64xf32>
    %2 = tpu.matmul %0, %1, %cst {dimension_numbers = #tpu.dot_dimension_numbers<[1], [0], [0], [1], [0, 0, 1, 1], [], []>} : vector<8x8xf32>, vector<8x64xf32>, vector<8x64xf32> -> vector<8x64xf32>
    %c0_3 = arith.constant 0 : index
    %c0_4 = arith.constant 0 : index
    %3 = vector.load %arg3[%c0_3, %c0_4] : memref<1x64xf32, #tpu.memory_space<vmem>>, vector<1x64xf32>
    %4 = vector.broadcast %3 : vector<1x64xf32> to vector<8x64xf32>
    %5 = arith.addf %2, %4 : vector<8x64xf32>
    %cst_5 = arith.constant 0.000000e+00 : f32
    %6 = vector.broadcast %cst_5 : f32 to vector<8x64xf32>
    %7 = arith.maximumf %5, %6 : vector<8x64xf32>
    %c0_6 = arith.constant 0 : index
    %c0_7 = arith.constant 0 : index
    %8 = vector.load %arg4[%c0_6, %c0_7] : memref<64x32xf32, #tpu.memory_space<vmem>>, vector<64x32xf32>
    %cst_8 = arith.constant dense<0.000000e+00> : vector<8x32xf32>
    %9 = tpu.matmul %7, %8, %cst_8 {dimension_numbers = #tpu.dot_dimension_numbers<[1], [0], [0], [1], [0, 0, 1, 1], [], []>} : vector<8x64xf32>, vector<64x32xf32>, vector<8x32xf32> -> vector<8x32xf32>
    %c0_9 = arith.constant 0 : index
    %c0_10 = arith.constant 0 : index
    %10 = vector.load %arg5[%c0_9, %c0_10] : memref<1x32xf32, #tpu.memory_space<vmem>>, vector<1x32xf32>
    %11 = vector.broadcast %10 : vector<1x32xf32> to vector<8x32xf32>
    %12 = arith.addf %9, %11 : vector<8x32xf32>
    %cst_11 = arith.constant 0.000000e+00 : f32
    %13 = vector.broadcast %cst_11 : f32 to vector<8x32xf32>
    %14 = arith.maximumf %12, %13 : vector<8x32xf32>
    %c0_12 = arith.constant 0 : index
    %c0_13 = arith.constant 0 : index
    %15 = vector.load %arg6[%c0_12, %c0_13] : memref<32x128xf32, #tpu.memory_space<vmem>>, vector<32x128xf32>
    %cst_14 = arith.constant dense<0.000000e+00> : vector<8x128xf32>
    %16 = tpu.matmul %14, %15, %cst_14 {dimension_numbers = #tpu.dot_dimension_numbers<[1], [0], [0], [1], [0, 0, 1, 1], [], []>} : vector<8x32xf32>, vector<32x128xf32>, vector<8x128xf32> -> vector<8x128xf32>
    %c0_15 = arith.constant 0 : index
    %c0_16 = arith.constant 0 : index
    %17 = vector.load %arg7[%c0_15, %c0_16] : memref<1x128xf32, #tpu.memory_space<vmem>>, vector<1x128xf32>
    %18 = vector.broadcast %17 : vector<1x128xf32> to vector<8x128xf32>
    %19 = arith.addf %16, %18 : vector<8x128xf32>
    %c0_17 = arith.constant 0 : index
    %c0_18 = arith.constant 0 : index
    %20 = vector.load %arg8[%c0_17, %c0_18] : memref<8x128xf32, #tpu.memory_space<vmem>>, vector<8x128xf32>
    tpu.vector_store %arg8[%c0_17, %c0_18], %19 {strides = array<i32>} : memref<8x128xf32, #tpu.memory_space<vmem>>, vector<8x128xf32>,
    return
  }
  func.func @transform_0(%arg0: i32) -> (i32, i32) {
    %c0_i32 = arith.constant 0 : i32
    %c0_i32_0 = arith.constant 0 : i32
    return %arg0, %c0_i32 : i32, i32
  }
  func.func @transform_1(%arg0: i32) -> (i32, i32) {
    %c0_i32 = arith.constant 0 : i32
    %c0_i32_0 = arith.constant 0 : i32
    %c0_i32_1 = arith.constant 0 : i32
    return %c0_i32, %c0_i32_0 : i32, i32
  }
  func.func @transform_2(%arg0: i32) -> (i32, i32) {
    %c0_i32 = arith.constant 0 : i32
    %c0_i32_0 = arith.constant 0 : i32
    %c0_i32_1 = arith.constant 0 : i32
    return %c0_i32, %c0_i32_0 : i32, i32
  }
  func.func @transform_3(%arg0: i32) -> (i32, i32) {
    %c0_i32 = arith.constant 0 : i32
    %c0_i32_0 = arith.constant 0 : i32
    %c0_i32_1 = arith.constant 0 : i32
    return %c0_i32, %c0_i32_0 : i32, i32
  }
  func.func @transform_4(%arg0: i32) -> (i32, i32) {
    %c0_i32 = arith.constant 0 : i32
    %c0_i32_0 = arith.constant 0 : i32
    %c0_i32_1 = arith.constant 0 : i32
    return %c0_i32, %c0_i32_0 : i32, i32
  }
  func.func @transform_5(%arg0: i32) -> (i32, i32) {
    %c0_i32 = arith.constant 0 : i32
    %c0_i32_0 = arith.constant 0 : i32
    %c0_i32_1 = arith.constant 0 : i32
    return %c0_i32, %c0_i32_0 : i32, i32
  }
  func.func @transform_6(%arg0: i32) -> (i32, i32) {
    %c0_i32 = arith.constant 0 : i32
    %c0_i32_0 = arith.constant 0 : i32
    %c0_i32_1 = arith.constant 0 : i32
    return %c0_i32, %c0_i32_0 : i32, i32
  }
  func.func @transform_7(%arg0: i32) -> (i32, i32) {
    %c0_i32 = arith.constant 0 : i32
    %c0_i32_0 = arith.constant 0 : i32
    return %arg0, %c0_i32 : i32, i32
  }
}

</mosaic_0001>

<llo_original>
// kernel: mlp_forward.1
$region0: #{mlp_forward.1}
  #allocation0 [shape = 'u32[]', space=smem, size = 0x4, offset = 0x4, fixed_abs, tag = 'smem constant byte address 0x4 - core index']
  #allocation1 [shape = 'u32[144,128]{1,0:T(1,128)}', space=vmem, size = 0x12000, scoped, tag = 'internal scratch']
  %s0 = inlined_call_operand.vmem [shape: f32[8,8], index: 0, kind: input, shape index: {}]
  %s1 = inlined_call_operand.vmem [shape: f32[8,64], index: 1, kind: input, shape index: {}]
  %s2 = inlined_call_operand.vmem [shape: f32[1,64], index: 2, kind: input, shape index: {}]
  %s3 = inlined_call_operand.vmem [shape: f32[64,32], index: 3, kind: input, shape index: {}]
  %s4 = inlined_call_operand.vmem [shape: f32[1,32], index: 4, kind: input, shape index: {}]
  %s5 = inlined_call_operand.vmem [shape: f32[32,128], index: 5, kind: input, shape index: {}]
  %s6 = inlined_call_operand.vmem [shape: f32[1,128], index: 6, kind: input, shape index: {}]
  %s7 = inlined_call_operand.vmem [shape: f32[8,128], index: 7, kind: output, shape index: {}]
  %s8 = sld [smem:[#allocation0]]
  $region38: #{mlp_forward.1} parent=0
    _
  %s10 = ssub.s32 1, %s8
  %s11 = scalar_select 0, %s10, %s8
  // Predicated region
  $region2: #{mlp_forward.1} parent=0 // pred_check
    _
  $region3: #{mlp_forward.1} parent=0 // pred_check_branch
    %13 = sbr.rel (0) target = $region5
  $region4: #{mlp_forward.1} parent=0 // pred_region
    _
  $region5: #{mlp_forward.1} parent=0 // pred_fallthru
    _
  // Predicated region
  $region6: #{mlp_forward.1} parent=0 // pred_check
    _
  $region7: #{mlp_forward.1} parent=0 // pred_check_branch
    %15 = sbr.rel (0) target = $region9
  $region8: #{mlp_forward.1} parent=0 // pred_region
    _
  $region9: #{mlp_forward.1} parent=0 // pred_fallthru
    _
  // Predicated region
  $region10: #{mlp_forward.1} parent=0 // pred_check
    _
  $region11: #{mlp_forward.1} parent=0 // pred_check_branch
    %17 = sbr.rel (0) target = $region13
  $region12: #{mlp_forward.1} parent=0 // pred_region
    _
  $region13: #{mlp_forward.1} parent=0 // pred_fallthru
    _
  // Predicated region
  $region14: #{mlp_forward.1} parent=0 // pred_check
    _
  $region15: #{mlp_forward.1} parent=0 // pred_check_branch
    %19 = sbr.rel (0) target = $region17
  $region16: #{mlp_forward.1} parent=0 // pred_region
    _
  $region17: #{mlp_forward.1} parent=0 // pred_fallthru
    _
  // Predicated region
  $region18: #{mlp_forward.1} parent=0 // pred_check
    _
  $region19: #{mlp_forward.1} parent=0 // pred_check_branch
    %21 = sbr.rel (0) target = $region21
  $region20: #{mlp_forward.1} parent=0 // pred_region
    _
  $region21: #{mlp_forward.1} parent=0 // pred_fallthru
    _
  // Predicated region
  $region22: #{mlp_forward.1} parent=0 // pred_check
    _
  $region23: #{mlp_forward.1} parent=0 // pred_check_branch
    %23 = sbr.rel (0) target = $region25
  $region24: #{mlp_forward.1} parent=0 // pred_region
    _
  $region25: #{mlp_forward.1} parent=0 // pred_fallthru
    _
  // Predicated region
  $region26: #{mlp_forward.1} parent=0 // pred_check
    _
  $region27: #{mlp_forward.1} parent=0 // pred_check_branch
    %25 = sbr.rel (0) target = $region29
  $region28: #{mlp_forward.1} parent=0 // pred_region
    _
  $region29: #{mlp_forward.1} parent=0 // pred_fallthru
    _
  %v26 = vld [vmem:[%s0] sm:$0xff]
  %v27 = vld [vmem:[%s1] sm:$0xff]
  %v28 = vld [vmem:[%s2] sm:$0x1]
  %v30 = vlaneseq
  %v31 = vshrl.u32 %v30, 7
  %v32 = vsub.s32 0, %v31
  %v33 = vrot.slane %v28, %v32
  %vm35 = vcmask 64512
  %v37 = vsel %vm35, %v26, 0
  %39 = vmatprep.subr.mxu0 0.0
  %40 = vmatpush1.msra.mxu0 %v27
  %41 = vmatprep.subr.mxu0 0.0
  %42 = vmatpush1.msra.mxu0 0.0
  %43 = vmatprep.subr.mxu0 0.0
  %44 = vmatpush1.msra.mxu0 0.0
  %45 = vmatprep.subr.mxu0 0.0
  %46 = vmatpush1.msra.mxu0 0.0
  %47 = vmatprep.subr.mxu0 0.0
  %48 = vmatpush1.msra.mxu0 0.0
  %49 = vmatprep.subr.mxu0 0.0
  %50 = vmatpush1.msra.mxu0 0.0
  %51 = vmatprep.subr.mxu0 0.0
  %52 = vmatpush1.msra.mxu0 0.0
  %53 = vmatprep.subr.mxu0 0.0
  %54 = vmatpush1.msra.mxu0 0.0
  %55 = vmatprep.subr.mxu0 0.0
  %56 = vmatpush1.msra.mxu0 0.0
  %57 = vmatprep.subr.mxu0 0.0
  %58 = vmatpush1.msra.mxu0 0.0
  %59 = vmatprep.subr.mxu0 0.0
  %60 = vmatpush1.msra.mxu0 0.0
  %61 = vmatprep.subr.mxu0 0.0
  %62 = vmatpush1.msra.mxu0 0.0
  %63 = vmatprep.subr.mxu0 0.0
  %64 = vmatpush1.msra.mxu0 0.0
  %65 = vmatprep.subr.mxu0 0.0
  %66 = vmatpush1.msra.mxu0 0.0
  %67 = vmatprep.subr.mxu0 0.0
  %68 = vmatpush1.msra.mxu0 0.0
  %69 = vmatprep.subr.mxu0 0.0
  %70 = vmatpush1.msra.mxu0 0.0
  %71 = vmatprep.subr.mxu0 0.0
  %72 = vmatpush1.msra.mxu0 0.0
  %73 = vmatprep.subr.mxu0 0.0
  %74 = vmatpush1.msra.mxu0 0.0
  %75 = vmatprep.subr.mxu0 0.0
  %76 = vmatpush1.msra.mxu0 0.0
  %77 = vmatprep.subr.mxu0 0.0
  %78 = vmatpush1.msra.mxu0 0.0
  %79 = vmatprep.subr.mxu0 0.0
  %80 = vmatpush1.msra.mxu0 0.0
  %81 = vmatprep.subr.mxu0 0.0
  %82 = vmatpush1.msra.mxu0 0.0
  %83 = vmatprep.subr.mxu0 0.0
  %84 = vmatpush1.msra.mxu0 0.0
  %85 = vmatprep.subr.mxu0 0.0
  %86 = vmatpush1.msra.mxu0 0.0
  %87 = vmatprep.subr.mxu0 0.0
  %88 = vmatpush1.msra.mxu0 0.0
  %89 = vmatprep.subr.mxu0 0.0
  %90 = vmatpush1.msra.mxu0 0.0
  %91 = vmatprep.subr.mxu0 0.0
  %92 = vmatpush1.msra.mxu0 0.0
  %93 = vmatprep.subr.mxu0 0.0
  %94 = vmatpush1.msra.mxu0 0.0
  %95 = vmatprep.subr.mxu0 0.0
  %96 = vmatpush1.msra.mxu0 0.0
  %97 = vmatprep.subr.mxu0 0.0
  %98 = vmatpush1.msra.mxu0 0.0
  %99 = vmatprep.subr.mxu0 0.0
  %100 = vmatpush1.msra.mxu0 0.0
  %101 = vmatprep.subr.mxu0 0.0
  %102 = vmatpush1.msra.mxu0 0.0
  %103 = vmatprep.mubr.f32.mxu0 0.0
  %104 = vmatmul.mubr.f32.gmra.mrb[0].mxu0 %v37
  %v105 = vpop.f32.mrb[0].mxu0
  %v106 = vadd.f32 %v33, %v105
  %v107 = vpop.f32.mrb[0].mxu0
  %108 = vdwg.mxu0
  %v109 = vmax.f32 %v106, 0.0
  %v110 = vld [vmem:[%s3] sm:$0xff]
  %v111 = vld [vmem:[%s3 + $0x8] sm:$0xff]
  %v112 = vld [vmem:[%s3 + $0x10] sm:$0xff]
  %v113 = vld [vmem:[%s3 + $0x18] sm:$0xff]
  %v114 = vld [vmem:[%s3 + $0x20] sm:$0xff]
  %v115 = vld [vmem:[%s3 + $0x28] sm:$0xff]
  %v116 = vld [vmem:[%s3 + $0x30] sm:$0xff]
  %v117 = vld [vmem:[%s3 + $0x38] sm:$0xff]
  %v118 = vld [vmem:[%s4] sm:$0x1]
  %v120 = vlaneseq
  %v121 = vshrl.u32 %v120, 7
  %v122 = vsub.s32 0, %v121
  %v123 = vrot.slane %v118, %v122
  %vm125 = vcmask 523264
  %v127 = vsel %vm125, %v109, 0
  %129 = vmatprep.subr.mxu0 0.0
  %130 = vmatpush1.msra.mxu0 %v110
  %131 = vmatprep.subr.mxu0 0.0
  %132 = vmatpush1.msra.mxu0 %v111
  %133 = vmatprep.subr.mxu0 0.0
  %134 = vmatpush1.msra.mxu0 %v112
  %135 = vmatprep.subr.mxu0 0.0
  %136 = vmatpush1.msra.mxu0 %v113
  %137 = vmatprep.subr.mxu0 0.0
  %138 = vmatpush1.msra.mxu0 %v114
  %139 = vmatprep.subr.mxu0 0.0
  %140 = vmatpush1.msra.mxu0 %v115
  %141 = vmatprep.subr.mxu0 0.0
  %142 = vmatpush1.msra.mxu0 %v116
  %143 = vmatprep.subr.mxu0 0.0
  %144 = vmatpush1.msra.mxu0 %v117
  %145 = vmatprep.subr.mxu0 0.0
  %146 = vmatpush1.msra.mxu0 0.0
  %147 = vmatprep.subr.mxu0 0.0
  %148 = vmatpush1.msra.mxu0 0.0
  %149 = vmatprep.subr.mxu0 0.0
  %150 = vmatpush1.msra.mxu0 0.0
  %151 = vmatprep.subr.mxu0 0.0
  %152 = vmatpush1.msra.mxu0 0.0
  %153 = vmatprep.subr.mxu0 0.0
  %154 = vmatpush1.msra.mxu0 0.0
  %155 = vmatprep.subr.mxu0 0.0
  %156 = vmatpush1.msra.mxu0 0.0
  %157 = vmatprep.subr.mxu0 0.0
  %158 = vmatpush1.msra.mxu0 0.0
  %159 = vmatprep.subr.mxu0 0.0
  %160 = vmatpush1.msra.mxu0 0.0
  %161 = vmatprep.subr.mxu0 0.0
  %162 = vmatpush1.msra.mxu0 0.0
  %163 = vmatprep.subr.mxu0 0.0
  %164 = vmatpush1.msra.mxu0 0.0
  %165 = vmatprep.subr.mxu0 0.0
  %166 = vmatpush1.msra.mxu0 0.0
  %167 = vmatprep.subr.mxu0 0.0
  %168 = vmatpush1.msra.mxu0 0.0
  %169 = vmatprep.subr.mxu0 0.0
  %170 = vmatpush1.msra.mxu0 0.0
  %171 = vmatprep.subr.mxu0 0.0
  %172 = vmatpush1.msra.mxu0 0.0
  %173 = vmatprep.subr.mxu0 0.0
  %174 = vmatpush1.msra.mxu0 0.0
  %175 = vmatprep.subr.mxu0 0.0
  %176 = vmatpush1.msra.mxu0 0.0
  %177 = vmatprep.subr.mxu0 0.0
  %178 = vmatpush1.msra.mxu0 0.0
  %179 = vmatprep.subr.mxu0 0.0
  %180 = vmatpush1.msra.mxu0 0.0
  %181 = vmatprep.subr.mxu0 0.0
  %182 = vmatpush1.msra.mxu0 0.0
  %183 = vmatprep.subr.mxu0 0.0
  %184 = vmatpush1.msra.mxu0 0.0
  %185 = vmatprep.subr.mxu0 0.0
  %186 = vmatpush1.msra.mxu0 0.0
  %187 = vmatprep.subr.mxu0 0.0
  %188 = vmatpush1.msra.mxu0 0.0
  %189 = vmatprep.subr.mxu0 0.0
  %190 = vmatpush1.msra.mxu0 0.0
  %191 = vmatprep.subr.mxu0 0.0
  %192 = vmatpush1.msra.mxu0 0.0
  %193 = vmatprep.mubr.f32.mxu0 0.0
  %194 = vmatmul.mubr.f32.gmra.mrb[0].mxu0 %v127
  %v195 = vpop.f32.mrb[0].mxu0
  %v196 = vadd.f32 %v123, %v195
  %v197 = vpop.f32.mrb[0].mxu0
  %198 = vdwg.mxu0
  %v199 = vmax.f32 %v196, 0.0
  %v200 = vld [vmem:[%s5] sm:$0xff]
  %v201 = vld [vmem:[%s5 + $0x8] sm:$0xff]
  %v202 = vld [vmem:[%s5 + $0x10] sm:$0xff]
  %v203 = vld [vmem:[%s5 + $0x18] sm:$0xff]
  %v204 = vld [vmem:[%s6] sm:$0x1]
  %v206 = vlaneseq
  %v207 = vshrl.u32 %v206, 7
  %v208 = vsub.s32 0, %v207
  %v209 = vrot.slane %v204, %v208
  %vm211 = vcmask 261120
  %v213 = vsel %vm211, %v199, 0
  %215 = vmatprep.subr.mxu0 0.0
  %216 = vmatpush1.msra.mxu0 %v200
  %217 = vmatprep.subr.mxu0 0.0
  %218 = vmatpush1.msra.mxu0 %v201
  %219 = vmatprep.subr.mxu0 0.0
  %220 = vmatpush1.msra.mxu0 %v202
  %221 = vmatprep.subr.mxu0 0.0
  %222 = vmatpush1.msra.mxu0 %v203
  %223 = vmatprep.subr.mxu0 0.0
  %224 = vmatpush1.msra.mxu0 0.0
  %225 = vmatprep.subr.mxu0 0.0
  %226 = vmatpush1.msra.mxu0 0.0
  %227 = vmatprep.subr.mxu0 0.0
  %228 = vmatpush1.msra.mxu0 0.0
  %229 = vmatprep.subr.mxu0 0.0
  %230 = vmatpush1.msra.mxu0 0.0
  %231 = vmatprep.subr.mxu0 0.0
  %232 = vmatpush1.msra.mxu0 0.0
  %233 = vmatprep.subr.mxu0 0.0
  %234 = vmatpush1.msra.mxu0 0.0
  %235 = vmatprep.subr.mxu0 0.0
  %236 = vmatpush1.msra.mxu0 0.0
  %237 = vmatprep.subr.mxu0 0.0
  %238 = vmatpush1.msra.mxu0 0.0
  %239 = vmatprep.subr.mxu0 0.0
  %240 = vmatpush1.msra.mxu0 0.0
  %241 = vmatprep.subr.mxu0 0.0
  %242 = vmatpush1.msra.mxu0 0.0
  %243 = vmatprep.subr.mxu0 0.0
  %244 = vmatpush1.msra.mxu0 0.0
  %245 = vmatprep.subr.mxu0 0.0
  %246 = vmatpush1.msra.mxu0 0.0
  %247 = vmatprep.subr.mxu0 0.0
  %248 = vmatpush1.msra.mxu0 0.0
  %249 = vmatprep.subr.mxu0 0.0
  %250 = vmatpush1.msra.mxu0 0.0
  %251 = vmatprep.subr.mxu0 0.0
  %252 = vmatpush1.msra.mxu0 0.0
  %253 = vmatprep.subr.mxu0 0.0
  %254 = vmatpush1.msra.mxu0 0.0
  %255 = vmatprep.subr.mxu0 0.0
  %256 = vmatpush1.msra.mxu0 0.0
  %257 = vmatprep.subr.mxu0 0.0
  %258 = vmatpush1.msra.mxu0 0.0
  %259 = vmatprep.subr.mxu0 0.0
  %260 = vmatpush1.msra.mxu0 0.0
  %261 = vmatprep.subr.mxu0 0.0
  %262 = vmatpush1.msra.mxu0 0.0
  %263 = vmatprep.subr.mxu0 0.0
  %264 = vmatpush1.msra.mxu0 0.0
  %265 = vmatprep.subr.mxu0 0.0
  %266 = vmatpush1.msra.mxu0 0.0
  %267 = vmatprep.subr.mxu0 0.0
  %268 = vmatpush1.msra.mxu0 0.0
  %269 = vmatprep.subr.mxu0 0.0
  %270 = vmatpush1.msra.mxu0 0.0
  %271 = vmatprep.subr.mxu0 0.0
  %272 = vmatpush1.msra.mxu0 0.0
  %273 = vmatprep.subr.mxu0 0.0
  %274 = vmatpush1.msra.mxu0 0.0
  %275 = vmatprep.subr.mxu0 0.0
  %276 = vmatpush1.msra.mxu0 0.0
  %277 = vmatprep.subr.mxu0 0.0
  %278 = vmatpush1.msra.mxu0 0.0
  %279 = vmatprep.mubr.f32.mxu0 0.0
  %280 = vmatmul.mubr.f32.gmra.mrb[0].mxu0 %v213
  %v281 = vpop.f32.mrb[0].mxu0
  %v282 = vadd.f32 %v209, %v281
  %v283 = vpop.f32.mrb[0].mxu0
  %284 = vdwg.mxu0
  %285 = vst [vmem:[%s7] sm:$0xff] %v282
  // Predicated region
  $region30: #{mlp_forward.1} parent=0 // pred_check
    _
  $region31: #{mlp_forward.1} parent=0 // pred_check_branch
    %287 = sbr.rel (0) target = $region33
  $region32: #{mlp_forward.1} parent=0 // pred_region
    _
  $region33: #{mlp_forward.1} parent=0 // pred_fallthru
    _
  // Predicated region
  $region34: #{mlp_forward.1} parent=0 // pred_check
    _
  $region35: #{mlp_forward.1} parent=0 // pred_check_branch
    %289 = sbr.rel (0) target = $region37
  $region36: #{mlp_forward.1} parent=0 // pred_region
    _
  $region37: #{mlp_forward.1} parent=0 // pred_fallthru
    _

</llo_original>
